<compile_context>
chip_gen: v6e
topology: v6e:2x2x1
jax: 0.10.0
libtpu: 0.0.40
codegen_flags: <defaults>
</compile_context>

<pallas_src>
import functools

import jax
import jax.numpy as jnp
from jax.experimental import pallas as pl
from jax.experimental.pallas import tpu as pltpu

NUM_CLASSES = 3
EPS = 1e-07
LANES = 128


def _iou_kernel(yhat_ref, y_ref, inter_ref, card_ref, *, num_classes):
    # yhat_ref: (C, TR, 128) logits; y_ref: (TR, 128) int32 labels.
    # inter_ref / card_ref: (C, 128) f32 per-class lane-partial accumulators
    # (output blocks, resident across the tile axis for a fixed batch index).
    @pl.when(pl.program_id(1) == 0)
    def _():
        inter_ref[...] = jnp.zeros_like(inter_ref)
        card_ref[...] = jnp.zeros_like(card_ref)

    labels = y_ref[...]                                   # (TR, 128) int32

    # Running argmax over the class axis — pure elementwise VPU work,
    # first-occurrence tie-break (matches torch.argmax of softmax(yhat)).
    best = yhat_ref[0].astype(jnp.float32)                # (TR, 128)
    pred = jnp.zeros_like(labels)                         # (TR, 128) int32
    for c in range(1, num_classes):
        lc = yhat_ref[c].astype(jnp.float32)
        upd = lc > best
        best = jnp.where(upd, lc, best)
        pred = jnp.where(upd, c, pred)

    inter_rows = []
    card_rows = []
    for c in range(num_classes):
        p_f = (pred == c).astype(jnp.float32)             # pred one-hot, class c
        t_f = (labels == c).astype(jnp.float32)           # target one-hot, class c
        inter_rows.append(jnp.sum(p_f * t_f, axis=0, keepdims=True))  # (1, 128)
        card_rows.append(jnp.sum(p_f + t_f, axis=0, keepdims=True))   # (1, 128)

    inter_ref[...] += jnp.concatenate(inter_rows, axis=0)  # (C, 128)
    card_ref[...] += jnp.concatenate(card_rows, axis=0)    # (C, 128)


def _pick_tile_rows(rows, target_rows):
    """Largest legal tile (multiple of 8 or full extent) dividing `rows`."""
    if rows <= target_rows:
        return rows
    t = (min(target_rows, rows) // 8) * 8
    while t >= 8:
        if rows % t == 0:
            return t
        t -= 8
    return rows  # fallback: full extent (always layout-legal)


def iou_pallas(yhat, y, *, num_classes=NUM_CLASSES, eps=EPS, target_tile_rows=512):
    """yhat: [B, C, H, W] float logits (NCHW, as in PyTorch); y: [B, H, W] int labels."""
    B, C, H, W = yhat.shape
    assert C == num_classes
    hw = H * W
    # TODO(synk): spatial sizes with H*W not divisible by 128 would need a
    # masked remainder tile; not required for this demo wrapper.
    assert hw % LANES == 0, "demo wrapper requires H*W divisible by 128"
    rows = hw // LANES

    # Free reshapes (pure metadata, no HBM data movement) — keep NCHW layout.
    yhat4 = yhat.reshape(B, C, rows, LANES)
    y3 = y.reshape(B, rows, LANES).astype(jnp.int32)

    tr = _pick_tile_rows(rows, target_tile_rows)
    n_tiles = rows // tr

    kernel = functools.partial(_iou_kernel, num_classes=num_classes)

    inter_out, card_out = pl.pallas_call(
        kernel,
        out_shape=(
            jax.ShapeDtypeStruct((B, C, LANES), jnp.float32),
            jax.ShapeDtypeStruct((B, C, LANES), jnp.float32),
        ),
        grid_spec=pltpu.PrefetchScalarGridSpec(
            num_scalar_prefetch=0,
            grid=(B, n_tiles),
            in_specs=[
                pl.BlockSpec((None, C, tr, LANES), lambda b, i: (b, 0, i, 0)),
                pl.BlockSpec((None, tr, LANES), lambda b, i: (b, i, 0)),
            ],
            out_specs=(
                pl.BlockSpec((None, C, LANES), lambda b, i: (b, 0, 0)),
                pl.BlockSpec((None, C, LANES), lambda b, i: (b, 0, 0)),
            ),
        ),
        compiler_params=pltpu.CompilerParams(
            dimension_semantics=("parallel", "arbitrary"),
        ),
    )(yhat4, y3)

    # Tiny epilogue (O(B*C*128)): finish the per-class reductions.
    inter = jnp.sum(inter_out, axis=(0, 2))    # (C,)
    card = jnp.sum(card_out, axis=(0, 2))      # (C,)
    union = card - inter
    return jnp.mean(inter / (union + eps))


def _iou_reference(yhat, y, eps=EPS):
    """Pure-JAX reference reproducing the PyTorch forward semantics."""
    C = yhat.shape[1]
    t1h = jax.nn.one_hot(y, C, dtype=jnp.float32)                 # [B,H,W,C]
    t1h = jnp.transpose(t1h, (0, 3, 1, 2))                        # [B,C,H,W]
    pred = jnp.argmax(jax.nn.softmax(yhat, axis=1), axis=1)       # [B,H,W]
    p1h = jnp.transpose(jax.nn.one_hot(pred, C, dtype=jnp.float32), (0, 3, 1, 2))
    dims = (0, 2, 3)
    inter = jnp.sum(p1h * t1h, dims)
    card = jnp.sum(p1h + t1h, dims)
    union = card - inter
    return jnp.mean(inter / (union + eps))


if __name__ == "__main__":
    key = jax.random.PRNGKey(0)
    k1, k2 = jax.random.split(key)

    B, C, H, W = 2, NUM_CLASSES, 16, 16
    yhat = jax.random.normal(k1, (B, C, H, W), dtype=jnp.float32)
    y = jax.random.randint(k2, (B, H, W), 0, NUM_CLASSES, dtype=jnp.int32)

    loss = iou_pallas(yhat, y)
    jax.block_until_ready(loss)

    ref = _iou_reference(yhat, y)
    assert jnp.allclose(loss, ref, atol=1e-5, rtol=1e-5), (loss, ref)

    print("KERNEL_OK")
</pallas_src>

<mosaic_0001>
module attributes {stable_mosaic.version = 11 : i64} {
  func.func @_iou_kernel(%arg0: i32, %arg1: i32, %arg2: memref<1x3x2x128xf32, #tpu.memory_space<vmem>>, %arg3: memref<1x2x128xi32, #tpu.memory_space<vmem>>, %arg4: memref<1x3x128xf32, #tpu.memory_space<vmem>>, %arg5: memref<1x3x128xf32, #tpu.memory_space<vmem>>) attributes {dimension_semantics = [#tpu.dimension_semantics<parallel>, #tpu.dimension_semantics<arbitrary>], iteration_bounds = array<i64: 2, 1>, scalar_prefetch = 0 : i64, scratch_operands = 0 : i64, tpu.core_type = #tpu.core_type<tc>, window_params = [{transform_indices = @transform_0, window_bounds = array<i64: 1, 3, 2, 128>}, {transform_indices = @transform_1, window_bounds = array<i64: 1, 2, 128>}, {transform_indices = @transform_2, window_bounds = array<i64: 1, 3, 128>}, {transform_indices = @transform_3, window_bounds = array<i64: 1, 3, 128>}]} {
    %c0_i32 = arith.constant 0 : i32
    %0 = arith.cmpi eq, %arg1, %c0_i32 : i32
    %1 = arith.extui %0 : i1 to i32
    %c0_i32_0 = arith.constant 0 : i32
    %2 = arith.cmpi ne, %1, %c0_i32_0 : i32
    scf.if %2 {
      %cst_37 = arith.constant 0.000000e+00 : f32
      %75 = vector.broadcast %cst_37 : f32 to vector<3x128xf32>
      %c0_38 = arith.constant 0 : index
      %c0_39 = arith.constant 0 : index
      %c0_40 = arith.constant 0 : index
      %76 = vector.load %arg4[%c0_38, %c0_39, %c0_40] : memref<1x3x128xf32, #tpu.memory_space<vmem>>, vector<1x3x128xf32>
      %77 = vector.shape_cast %76 : vector<1x3x128xf32> to vector<3x128xf32>
      %78 = vector.shape_cast %75 : vector<3x128xf32> to vector<1x3x128xf32>
      tpu.vector_store %arg4[%c0_38, %c0_39, %c0_40], %78 {strides = array<i32>} : memref<1x3x128xf32, #tpu.memory_space<vmem>>, vector<1x3x128xf32>,
      %cst_41 = arith.constant 0.000000e+00 : f32
      %79 = vector.broadcast %cst_41 : f32 to vector<3x128xf32>
      %c0_42 = arith.constant 0 : index
      %c0_43 = arith.constant 0 : index
      %c0_44 = arith.constant 0 : index
      %80 = vector.load %arg5[%c0_42, %c0_43, %c0_44] : memref<1x3x128xf32, #tpu.memory_space<vmem>>, vector<1x3x128xf32>
      %81 = vector.shape_cast %80 : vector<1x3x128xf32> to vector<3x128xf32>
      %82 = vector.shape_cast %79 : vector<3x128xf32> to vector<1x3x128xf32>
      tpu.vector_store %arg5[%c0_42, %c0_43, %c0_44], %82 {strides = array<i32>} : memref<1x3x128xf32, #tpu.memory_space<vmem>>, vector<1x3x128xf32>,
    } else {
    }
    %c0 = arith.constant 0 : index
    %c0_1 = arith.constant 0 : index
    %c0_2 = arith.constant 0 : index
    %3 = vector.load %arg3[%c0, %c0_1, %c0_2] : memref<1x2x128xi32, #tpu.memory_space<vmem>>, vector<1x2x128xi32>
    %4 = vector.shape_cast %3 : vector<1x2x128xi32> to vector<2x128xi32>
    %c0_3 = arith.constant 0 : index
    %c0_4 = arith.constant 0 : index
    %c0_5 = arith.constant 0 : index
    %c0_6 = arith.constant 0 : index
    %5 = vector.load %arg2[%c0_3, %c0_4, %c0_5, %c0_6] : memref<1x3x2x128xf32, #tpu.memory_space<vmem>>, vector<1x1x2x128xf32>
    %6 = vector.shape_cast %5 : vector<1x1x2x128xf32> to vector<2x128xf32>
    %c0_i32_7 = arith.constant 0 : i32
    %7 = vector.broadcast %c0_i32_7 : i32 to vector<2x128xi32>
    %c0_8 = arith.constant 0 : index
    %c1 = arith.constant 1 : index
    %c0_9 = arith.constant 0 : index
    %c0_10 = arith.constant 0 : index
    %8 = vector.load %arg2[%c0_8, %c1, %c0_9, %c0_10] : memref<1x3x2x128xf32, #tpu.memory_space<vmem>>, vector<1x1x2x128xf32>
    %9 = vector.shape_cast %8 : vector<1x1x2x128xf32> to vector<2x128xf32>
    %10 = arith.cmpf ogt, %9, %6 : vector<2x128xf32>
    %11 = arith.select %10, %9, %6 : vector<2x128xi1>, vector<2x128xf32>
    %c1_i32 = arith.constant 1 : i32
    %12 = vector.broadcast %c1_i32 : i32 to vector<2x128xi32>
    %13 = arith.select %10, %12, %7 : vector<2x128xi1>, vector<2x128xi32>
    %c0_11 = arith.constant 0 : index
    %c2 = arith.constant 2 : index
    %c0_12 = arith.constant 0 : index
    %c0_13 = arith.constant 0 : index
    %14 = vector.load %arg2[%c0_11, %c2, %c0_12, %c0_13] : memref<1x3x2x128xf32, #tpu.memory_space<vmem>>, vector<1x1x2x128xf32>
    %15 = vector.shape_cast %14 : vector<1x1x2x128xf32> to vector<2x128xf32>
    %16 = arith.cmpf ogt, %15, %11 : vector<2x128xf32>
    %c2_i32 = arith.constant 2 : i32
    %17 = vector.broadcast %c2_i32 : i32 to vector<2x128xi32>
    %18 = arith.select %16, %17, %13 : vector<2x128xi1>, vector<2x128xi32>
    %c0_i32_14 = arith.constant 0 : i32
    %19 = vector.broadcast %c0_i32_14 : i32 to vector<2x128xi32>
    %20 = arith.cmpi eq, %18, %19 : vector<2x128xi32>
    %21 = arith.extui %20 : vector<2x128xi1> to vector<2x128xi32>
    %22 = arith.sitofp %21 : vector<2x128xi32> to vector<2x128xf32>
    %c0_i32_15 = arith.constant 0 : i32
    %23 = vector.broadcast %c0_i32_15 : i32 to vector<2x128xi32>
    %24 = arith.cmpi eq, %4, %23 : vector<2x128xi32>
    %25 = arith.extui %24 : vector<2x128xi1> to vector<2x128xi32>
    %26 = arith.sitofp %25 : vector<2x128xi32> to vector<2x128xf32>
    %27 = arith.mulf %22, %26 : vector<2x128xf32>
    %cst = arith.constant dense<0.000000e+00> : vector<128xf32>
    %28 = vector.multi_reduction <add>, %27, %cst [0] : vector<2x128xf32> to vector<128xf32>
    %29 = vector.shape_cast %28 : vector<128xf32> to vector<1x128xf32>
    %30 = arith.addf %22, %26 : vector<2x128xf32>
    %cst_16 = arith.constant dense<0.000000e+00> : vector<128xf32>
    %31 = vector.multi_reduction <add>, %30, %cst_16 [0] : vector<2x128xf32> to vector<128xf32>
    %32 = vector.shape_cast %31 : vector<128xf32> to vector<1x128xf32>
    %c1_i32_17 = arith.constant 1 : i32
    %33 = vector.broadcast %c1_i32_17 : i32 to vector<2x128xi32>
    %34 = arith.cmpi eq, %18, %33 : vector<2x128xi32>
    %35 = arith.extui %34 : vector<2x128xi1> to vector<2x128xi32>
    %36 = arith.sitofp %35 : vector<2x128xi32> to vector<2x128xf32>
    %c1_i32_18 = arith.constant 1 : i32
    %37 = vector.broadcast %c1_i32_18 : i32 to vector<2x128xi32>
    %38 = arith.cmpi eq, %4, %37 : vector<2x128xi32>
    %39 = arith.extui %38 : vector<2x128xi1> to vector<2x128xi32>
    %40 = arith.sitofp %39 : vector<2x128xi32> to vector<2x128xf32>
    %41 = arith.mulf %36, %40 : vector<2x128xf32>
    %cst_19 = arith.constant dense<0.000000e+00> : vector<128xf32>
    %42 = vector.multi_reduction <add>, %41, %cst_19 [0] : vector<2x128xf32> to vector<128xf32>
    %43 = vector.shape_cast %42 : vector<128xf32> to vector<1x128xf32>
    %44 = arith.addf %36, %40 : vector<2x128xf32>
    %cst_20 = arith.constant dense<0.000000e+00> : vector<128xf32>
    %45 = vector.multi_reduction <add>, %44, %cst_20 [0] : vector<2x128xf32> to vector<128xf32>
    %46 = vector.shape_cast %45 : vector<128xf32> to vector<1x128xf32>
    %c2_i32_21 = arith.constant 2 : i32
    %47 = vector.broadcast %c2_i32_21 : i32 to vector<2x128xi32>
    %48 = arith.cmpi eq, %18, %47 : vector<2x128xi32>
    %49 = arith.extui %48 : vector<2x128xi1> to vector<2x128xi32>
    %50 = arith.sitofp %49 : vector<2x128xi32> to vector<2x128xf32>
    %c2_i32_22 = arith.constant 2 : i32
    %51 = vector.broadcast %c2_i32_22 : i32 to vector<2x128xi32>
    %52 = arith.cmpi eq, %4, %51 : vector<2x128xi32>
    %53 = arith.extui %52 : vector<2x128xi1> to vector<2x128xi32>
    %54 = arith.sitofp %53 : vector<2x128xi32> to vector<2x128xf32>
    %55 = arith.mulf %50, %54 : vector<2x128xf32>
    %cst_23 = arith.constant dense<0.000000e+00> : vector<128xf32>
    %56 = vector.multi_reduction <add>, %55, %cst_23 [0] : vector<2x128xf32> to vector<128xf32>
    %57 = vector.shape_cast %56 : vector<128xf32> to vector<1x128xf32>
    %58 = arith.addf %50, %54 : vector<2x128xf32>
    %cst_24 = arith.constant dense<0.000000e+00> : vector<128xf32>
    %59 = vector.multi_reduction <add>, %58, %cst_24 [0] : vector<2x128xf32> to vector<128xf32>
    %60 = vector.shape_cast %59 : vector<128xf32> to vector<1x128xf32>
    %c0_25 = arith.constant 0 : index
    %c0_26 = arith.constant 0 : index
    %c0_27 = arith.constant 0 : index
    %61 = vector.load %arg4[%c0_25, %c0_26, %c0_27] : memref<1x3x128xf32, #tpu.memory_space<vmem>>, vector<1x3x128xf32>
    %62 = vector.shape_cast %61 : vector<1x3x128xf32> to vector<3x128xf32>
    %63 = tpu.concatenate %29, %43, %57 in 0 : vector<1x128xf32>, vector<1x128xf32>, vector<1x128xf32> -> vector<3x128xf32>
    %64 = arith.addf %62, %63 : vector<3x128xf32>
    %c0_28 = arith.constant 0 : index
    %c0_29 = arith.constant 0 : index
    %c0_30 = arith.constant 0 : index
    %65 = vector.load %arg4[%c0_28, %c0_29, %c0_30] : memref<1x3x128xf32, #tpu.memory_space<vmem>>, vector<1x3x128xf32>
    %66 = vector.shape_cast %65 : vector<1x3x128xf32> to vector<3x128xf32>
    %67 = vector.shape_cast %64 : vector<3x128xf32> to vector<1x3x128xf32>
    tpu.vector_store %arg4[%c0_28, %c0_29, %c0_30], %67 {strides = array<i32>} : memref<1x3x128xf32, #tpu.memory_space<vmem>>, vector<1x3x128xf32>,
    %c0_31 = arith.constant 0 : index
    %c0_32 = arith.constant 0 : index
    %c0_33 = arith.constant 0 : index
    %68 = vector.load %arg5[%c0_31, %c0_32, %c0_33] : memref<1x3x128xf32, #tpu.memory_space<vmem>>, vector<1x3x128xf32>
    %69 = vector.shape_cast %68 : vector<1x3x128xf32> to vector<3x128xf32>
    %70 = tpu.concatenate %32, %46, %60 in 0 : vector<1x128xf32>, vector<1x128xf32>, vector<1x128xf32> -> vector<3x128xf32>
    %71 = arith.addf %69, %70 : vector<3x128xf32>
    %c0_34 = arith.constant 0 : index
    %c0_35 = arith.constant 0 : index
    %c0_36 = arith.constant 0 : index
    %72 = vector.load %arg5[%c0_34, %c0_35, %c0_36] : memref<1x3x128xf32, #tpu.memory_space<vmem>>, vector<1x3x128xf32>
    %73 = vector.shape_cast %72 : vector<1x3x128xf32> to vector<3x128xf32>
    %74 = vector.shape_cast %71 : vector<3x128xf32> to vector<1x3x128xf32>
    tpu.vector_store %arg5[%c0_34, %c0_35, %c0_36], %74 {strides = array<i32>} : memref<1x3x128xf32, #tpu.memory_space<vmem>>, vector<1x3x128xf32>,
    return
  }
  func.func @transform_0(%arg0: i32, %arg1: i32) -> (i32, i32, i32, i32) {
    %c0_i32 = arith.constant 0 : i32
    %c0_i32_0 = arith.constant 0 : i32
    %c0_i32_1 = arith.constant 0 : i32
    return %arg0, %c0_i32, %arg1, %c0_i32_0 : i32, i32, i32, i32
  }
  func.func @transform_1(%arg0: i32, %arg1: i32) -> (i32, i32, i32) {
    %c0_i32 = arith.constant 0 : i32
    %c0_i32_0 = arith.constant 0 : i32
    return %arg0, %arg1, %c0_i32 : i32, i32, i32
  }
  func.func @transform_2(%arg0: i32, %arg1: i32) -> (i32, i32, i32) {
    %c0_i32 = arith.constant 0 : i32
    %c0_i32_0 = arith.constant 0 : i32
    %c0_i32_1 = arith.constant 0 : i32
    return %arg0, %c0_i32, %c0_i32_0 : i32, i32, i32
  }
  func.func @transform_3(%arg0: i32, %arg1: i32) -> (i32, i32, i32) {
    %c0_i32 = arith.constant 0 : i32
    %c0_i32_0 = arith.constant 0 : i32
    %c0_i32_1 = arith.constant 0 : i32
    return %arg0, %c0_i32, %c0_i32_0 : i32, i32, i32
  }
}

</mosaic_0001>

<llo_original>
// kernel: tpu_custom_call.1
$region0: #{tpu_custom_call.1}
  #allocation0 [shape = 'u32[]', space=smem, size = 0x4, offset = 0x4, fixed_abs, tag = 'smem constant byte address 0x4 - core index']
  #allocation1 [shape = 'u32[144,128]{1,0:T(1,128)}', space=vmem, size = 0x12000, scoped, tag = 'internal scratch']
  %s0 = inlined_call_operand.hbm [shape: f32[2,3,2,128], index: 0, kind: input, shape index: {}]
  %s1 = inlined_call_operand.hbm [shape: s32[2,2,128], index: 1, kind: input, shape index: {}]
  %s2 = inlined_call_operand.vmem [shape: f32[2,3,128], index: 2, kind: output, shape index: {0}]
  %s3 = inlined_call_operand.vmem [shape: f32[2,3,128], index: 3, kind: output, shape index: {1}]
  %4 = xla_tuple %s2, %s3
  %s5 = sld [smem:[#allocation0]]
  $region61: #{tpu_custom_call.1} parent=0
    _
  %s7 = ssub.s32 1, %s5
  %s8 = scalar_select 0, %s7, %s5
  $region1: #{tpu_custom_call.1} parent=0
    #allocation2 [shape = 'u8[6144]{0}', space=vmem, size = 0x1800, scoped, tag = 'input window, operand 0']
    #allocation3 [shape = 's32[2]{0}', space=sflag, size = 0x8, scoped, tag = 'scoped memory for tpu_custom_call.1']
    #allocation4 [shape = 'u8[2048]{0}', space=vmem, size = 0x800, scoped, tag = 'input window, operand 1']
    #allocation5 [shape = 's32[2]{0}', space=sflag, size = 0x8, scoped, tag = 'scoped memory for tpu_custom_call.1']
    %9 = vsyncpa [#allocation3], 0
    %s10 = scalar_lea.sflag [#allocation3], 1
    %11 = vsyncpa %s10, 0
    %12 = vsyncpa [#allocation5], 0
    %s13 = scalar_lea.sflag [#allocation5], 1
    %14 = vsyncpa %s13, 0
    loop: start=0, step=1, limit=4
    $region2: #{tpu_custom_call.1} parent=1 // loop_pre_header
      _
    $region3: #{tpu_custom_call.1} parent=1 // loop_header
      %s16 = sphi 0, %s20
      %p17 = scmp.ge.s32.totalorder %s16, 4
      %s23 = sphi 0, %s35
      %s24 = sphi 0, %s31
      %s25 = sphi 0, %s23
      %s26 = sphi 0, %s24
      %s27 = sphi 0, %s25
      %s28 = sphi 0, %s26
      %s40 = sphi 0, %s42
      %s43 = sphi 0, %s40
      %s44 = sphi 0, %s43
      %s60 = sphi 0, %s44
      %s68 = sphi 0, %s70
      %s71 = sphi 0, %s68
      %s72 = sphi 0, %s71
      %s88 = sphi 0, %s72
      %s94 = sphi 0, %s96
      %s97 = sphi 0, %s94
      %s98 = sphi 0, %s97
      %s114 = sphi 0, %s98
      %s120 = sphi 0, %s122
      %s123 = sphi 0, %s120
      %s124 = sphi 0, %s123
      %s140 = sphi 0, %s124
    $region4: #{tpu_custom_call.1} parent=1 // loop_header_branch
      %19 = sbr.rel (%p17) target = $region8
    $region5: #{tpu_custom_call.1} parent=1 // loop_body
      %s21 = ssub.s32 %s16, 1
      %s22 = ssub.s32 %s16, 2
      %s29 = sadd.s32 1, %s24
      %p30 = scmp.ge.s32.totalorder %s29, 1
      %s31 = scalar_select %p30, 0, %s29
      %s32 = sadd.s32 1, %s23
      %s33 = scalar_select %p30, %s32, %s23
      %p34 = scmp.ge.s32.totalorder %s33, 2
      %s35 = scalar_select %p34, 0, %s33
      %s36 = ssub.s32 %s23, %s35
      %s37 = ssub.s32 %s24, %s31
      %s38 = sor.u32 %s36, %s37
      %p39 = scmp.eq.s32.totalorder %s38, 0
      %s41 = sadd.s32 %s40, 1
      %s42 = scalar_select %p39, %s40, %s41
      %p45 = pneg %p39
      %p46 = scmp.eq.s32.totalorder %s16, 1
      %p47 = por %p45, %p46
      %p48 = scmp.ne.s32.totalorder %s40, %s43
      %p49 = scmp.eq.s32.totalorder %s16, 0
      %p50 = por %p48, %p49
      %p51 = scmp.ne.s32.totalorder %s40, %s43
      %p52 = scmp.eq.s32.totalorder %s21, 1
      %p53 = por %p51, %p52
      %p54 = scmp.ne.s32.totalorder %s43, %s44
      %p55 = scmp.eq.s32.totalorder %s21, 0
      %p56 = por %p54, %p55
      %p57 = scmp.ne.s32.totalorder %s43, %s44
      %p58 = scmp.eq.s32.totalorder %s22, 1
      %p59 = por %p57, %p58
      %p61 = scmp.ne.s32.totalorder %s44, %s60
      %p62 = scmp.eq.s32.totalorder %s22, 0
      %p63 = por %p61, %p62
      %s64 = ssub.s32 %s23, %s35
      %s65 = ssub.s32 %s24, %s31
      %s66 = sor.u32 %s64, %s65
      %p67 = scmp.eq.s32.totalorder %s66, 0
      %s69 = sadd.s32 %s68, 1
      %s70 = scalar_select %p67, %s68, %s69
      %p73 = pneg %p67
      %p74 = scmp.eq.s32.totalorder %s16, 1
      %p75 = por %p73, %p74
      %p76 = scmp.ne.s32.totalorder %s68, %s71
      %p77 = scmp.eq.s32.totalorder %s16, 0
      %p78 = por %p76, %p77
      %p79 = scmp.ne.s32.totalorder %s68, %s71
      %p80 = scmp.eq.s32.totalorder %s21, 1
      %p81 = por %p79, %p80
      %p82 = scmp.ne.s32.totalorder %s71, %s72
      %p83 = scmp.eq.s32.totalorder %s21, 0
      %p84 = por %p82, %p83
      %p85 = scmp.ne.s32.totalorder %s71, %s72
      %p86 = scmp.eq.s32.totalorder %s22, 1
      %p87 = por %p85, %p86
      %p89 = scmp.ne.s32.totalorder %s72, %s88
      %p90 = scmp.eq.s32.totalorder %s22, 0
      %p91 = por %p89, %p90
      %s92 = ssub.s32 %s23, %s35
      %p93 = scmp.eq.s32.totalorder %s92, 0
      %s95 = sadd.s32 %s94, 1
      %s96 = scalar_select %p93, %s94, %s95
      %p99 = pneg %p93
      %p100 = scmp.eq.s32.totalorder %s16, 1
      %p101 = por %p99, %p100
      %p102 = scmp.ne.s32.totalorder %s94, %s97
      %p103 = scmp.eq.s32.totalorder %s16, 0
      %p104 = por %p102, %p103
      %p105 = scmp.ne.s32.totalorder %s94, %s97
      %p106 = scmp.eq.s32.totalorder %s21, 1
      %p107 = por %p105, %p106
      %p108 = scmp.ne.s32.totalorder %s97, %s98
      %p109 = scmp.eq.s32.totalorder %s21, 0
      %p110 = por %p108, %p109
      %p111 = scmp.ne.s32.totalorder %s97, %s98
      %p112 = scmp.eq.s32.totalorder %s22, 1
      %p113 = por %p111, %p112
      %p115 = scmp.ne.s32.totalorder %s98, %s114
      %p116 = scmp.eq.s32.totalorder %s22, 0
      %p117 = por %p115, %p116
      %s118 = ssub.s32 %s23, %s35
      %p119 = scmp.eq.s32.totalorder %s118, 0
      %s121 = sadd.s32 %s120, 1
      %s122 = scalar_select %p119, %s120, %s121
      %p125 = pneg %p119
      %p126 = scmp.eq.s32.totalorder %s16, 1
      %p127 = por %p125, %p126
      %p128 = scmp.ne.s32.totalorder %s120, %s123
      %p129 = scmp.eq.s32.totalorder %s16, 0
      %p130 = por %p128, %p129
      %p131 = scmp.ne.s32.totalorder %s120, %s123
      %p132 = scmp.eq.s32.totalorder %s21, 1
      %p133 = por %p131, %p132
      %p134 = scmp.ne.s32.totalorder %s123, %s124
      %p135 = scmp.eq.s32.totalorder %s21, 0
      %p136 = por %p134, %p135
      %p137 = scmp.ne.s32.totalorder %s123, %s124
      %p138 = scmp.eq.s32.totalorder %s22, 1
      %p139 = por %p137, %p138
      %p141 = scmp.ne.s32.totalorder %s124, %s140
      %p142 = scmp.eq.s32.totalorder %s22, 0
      %p143 = por %p141, %p142
      %p144 = scmp.le.s32.totalorder 1, %s16
      %p145 = scmp.lt.s32.totalorder %s16, 3
      %p146 = pnand %p144, %p145
      %p147 = pneg %p146
      // Predicated region
      $region9: #{tpu_custom_call.1} parent=5 // pred_check
        _
      $region10: #{tpu_custom_call.1} parent=5 // pred_check_branch
        %149 = sbr.rel (%p146) target = $region12
      $region11: #{tpu_custom_call.1} parent=5 // pred_region
        %s150 = ssub.s32 %s16, 1
      $region12: #{tpu_custom_call.1} parent=5 // pred_fallthru
        _
      %p151 = scmp.lt.s32.totalorder %s16, 2
      // Predicated region
      $region13: #{tpu_custom_call.1} parent=5 // pred_check
        %p152 = pneg %p151
      $region14: #{tpu_custom_call.1} parent=5 // pred_check_branch
        %154 = sbr.rel (%p152) target = $region16
      $region15: #{tpu_custom_call.1} parent=5 // pred_region
        // Predicated region
        $region17: #{tpu_custom_call.1} parent=15 // pred_check
          %p155 = pneg %p50
        $region18: #{tpu_custom_call.1} parent=15 // pred_check_branch
          %157 = sbr.rel (%p155) target = $region20
        $region19: #{tpu_custom_call.1} parent=15 // pred_region
          %s158 = sand.u32 %s40, 1
          %s159 = scalar_lea.sflag [#allocation3], %s158
          %s160 = sand.u32 %s40, 1
          %s161 = smul.addr %s160, 6
          %s162 = scalar_lea.vmem [#allocation2], %s161
          %s164 = ssub.s32 96, 96
          %165 = vsyncadd %s159, %s164
          %s166 = smul.addr %s23, 3
          %s167 = sadd.s32 %s24, %s166
          %s168 = smul.addr %s167, 32
          %s169 = scalar_lea.hbm %s0, %s168
          %s170 = sshll.u32 %s162, 4
          %s171 = int_to_ptr.vmem [resolvable:$true] %s170
          %176 = dma.hbm_to_vmem [thread:$0]  %s169, 96, %s171, %s159, 32, 32, 2
        $region20: #{tpu_custom_call.1} parent=15 // pred_fallthru
          _
        // Predicated region
        $region21: #{tpu_custom_call.1} parent=15 // pred_check
          %p177 = pneg %p78
        $region22: #{tpu_custom_call.1} parent=15 // pred_check_branch
          %179 = sbr.rel (%p177) target = $region24
        $region23: #{tpu_custom_call.1} parent=15 // pred_region
          %s180 = sand.u32 %s68, 1
          %s181 = scalar_lea.sflag [#allocation5], %s180
          %s182 = sand.u32 %s68, 1
          %s183 = smul.addr %s182, 2
          %s184 = scalar_lea.vmem [#allocation4], %s183
          %s186 = ssub.s32 32, 32
          %187 = vsyncadd %s181, %s186
          %s188 = sadd.s32 %s24, %s23
          %s189 = smul.addr %s188, 32
          %s190 = scalar_lea.hbm %s1, %s189
          %s192 = sshll.u32 %s184, 4
          %s193 = int_to_ptr.vmem [resolvable:$true] %s192
          %195 = dma.hbm_to_vmem [thread:$0]  %s190, 32, %s193, %s181
        $region24: #{tpu_custom_call.1} parent=15 // pred_fallthru
          _
      $region16: #{tpu_custom_call.1} parent=5 // pred_fallthru
        _
      %p196 = scmp.le.s32.totalorder 1, %s16
      %p197 = scmp.lt.s32.totalorder %s16, 3
      %p198 = pnand %p196, %p197
      %p199 = pneg %p198
      // Predicated region
      $region25: #{tpu_custom_call.1} parent=5 // pred_check
        _
      $region26: #{tpu_custom_call.1} parent=5 // pred_check_branch
        %201 = sbr.rel (%p198) target = $region28
      $region27: #{tpu_custom_call.1} parent=5 // pred_region
        %s202 = ssub.s32 %s16, 1
        %s203 = sand.u32 %s43, 1
        %s204 = scalar_lea.sflag [#allocation3], %s203
        %s205 = sand.u32 %s43, 1
        %s206 = smul.addr %s205, 6
        %s207 = scalar_lea.vmem [#allocation2], %s206
        // Predicated region
        $region29: #{tpu_custom_call.1} parent=27 // pred_check
          %p208 = pneg %p56
        $region30: #{tpu_custom_call.1} parent=27 // pred_check_branch
          %210 = sbr.rel (%p208) target = $region32
        $region31: #{tpu_custom_call.1} parent=27 // pred_region
          %211 = dma.done %s204, 96
        $region32: #{tpu_custom_call.1} parent=27 // pred_fallthru
          _
        %s212 = sand.u32 %s71, 1
        %s213 = scalar_lea.sflag [#allocation5], %s212
        %s214 = sand.u32 %s71, 1
        %s215 = smul.addr %s214, 2
        %s216 = scalar_lea.vmem [#allocation4], %s215
        // Predicated region
        $region33: #{tpu_custom_call.1} parent=27 // pred_check
          %p217 = pneg %p84
        $region34: #{tpu_custom_call.1} parent=27 // pred_check_branch
          %219 = sbr.rel (%p217) target = $region36
        $region35: #{tpu_custom_call.1} parent=27 // pred_region
          %220 = dma.done %s213, 32
        $region36: #{tpu_custom_call.1} parent=27 // pred_fallthru
          _
        %s221 = sand.u32 %s43, 1
        %s222 = scalar_lea.sflag [#allocation3], %s221
        %s223 = sand.u32 %s43, 1
        %s224 = smul.addr %s223, 6
        %s225 = scalar_lea.vmem [#allocation2], %s224
        %p226 = pneg %p56
        %p227 = pneg %p53
        %s228 = sand.u32 %s71, 1
        %s229 = scalar_lea.sflag [#allocation5], %s228
        %s230 = sand.u32 %s71, 1
        %s231 = smul.addr %s230, 2
        %s232 = scalar_lea.vmem [#allocation4], %s231
        %p233 = pneg %p84
        %p234 = pneg %p81
        %p235 = pneg %p110
        %p236 = pneg %p107
        %p237 = scmp.lt.s32.totalorder %s25, 1
        %s238 = scalar_select %p237, %s25, 1
        %s239 = smul.addr %s238, 4
        %s240 = scalar_lea.vmem %s2, %s239
        %p241 = pneg %p136
        %p242 = pneg %p133
        %p243 = scmp.lt.s32.totalorder %s25, 1
        %s244 = scalar_select %p243, %s25, 1
        %s245 = smul.addr %s244, 4
        %s246 = scalar_lea.vmem %s3, %s245
        %p247 = scmp.lt.s32.totalorder %s25, 1
        %s248 = scalar_select %p247, %s25, 1
        %s249 = smul.addr %s248, 4
        %s250 = scalar_lea.vmem %s2, %s249
        %p251 = scmp.lt.s32.totalorder %s25, 1
        %s252 = scalar_select %p251, %s25, 1
        %s253 = smul.addr %s252, 4
        %s254 = scalar_lea.vmem %s3, %s253
        %p255 = scmp.eq.s32.totalorder %s26, 0
        // Predicated region
        $region37: #{tpu_custom_call.1} parent=27 // pred_check
          %p256 = pneg %p255
        $region38: #{tpu_custom_call.1} parent=27 // pred_check_branch
          %258 = sbr.rel (%p256) target = $region40
        $region39: #{tpu_custom_call.1} parent=27 // pred_region
          %259 = vst [vmem:[%s250] sm:$0x7] 0.0
          %260 = vst [vmem:[%s254] sm:$0x7] 0.0
        $region40: #{tpu_custom_call.1} parent=27 // pred_fallthru
          _
        %v261 = vld [vmem:[%s216] sm:$0x3]
        %v262 = vld [vmem:[%s207] sm:$0x3]
        %s263 = scalar_lea.vmem %s207, 2 [#allocation2]
        %v264 = vld [vmem:[%s263] sm:$0x3]
        %vm265 = vcmp.gt.f32.partialorder %v264, %v262
        %v266 = vsel %vm265, %v264, %v262
        %v267 = vsel %vm265, 1, 0
        %s268 = scalar_lea.vmem %s207, 4 [#allocation2]
        %v269 = vld [vmem:[%s268] sm:$0x3]
        %vm270 = vcmp.gt.f32.partialorder %v269, %v266
        %v271 = vsel %vm270, 2, %v267
        %vm272 = vcmp.eq.s32.totalorder %v271, 0
        %v273 = vsel %vm272, 1, 0
        %v274 = vcvt.s32.f32 %v273
        %vm275 = vcmp.eq.s32.totalorder %v261, 0
        %v276 = vsel %vm275, 1, 0
        %v277 = vcvt.s32.f32 %v276
        %v278 = vmul.f32 %v274, %v277
        %vm279 = vcmask 1041408
        %v280 = vsel %vm279, %v278, 0.0
        %v281 = vrot.slane %v280, 4
        %v282 = vadd.f32 %v280, %v281
        %v283 = vrot.slane %v282, 2
        %v284 = vadd.f32 %v282, %v283
        %v285 = vrot.slane %v284, 1
        %v286 = vadd.f32 %v284, %v285
        %v287 = vadd.f32 %v274, %v277
        %v288 = vsel %vm279, %v287, 0.0
        %v289 = vrot.slane %v288, 4
        %v290 = vadd.f32 %v288, %v289
        %v291 = vrot.slane %v290, 2
        %v292 = vadd.f32 %v290, %v291
        %v293 = vrot.slane %v292, 1
        %v294 = vadd.f32 %v292, %v293
        %vm295 = vcmp.eq.s32.totalorder %v271, 1
        %v296 = vsel %vm295, 1, 0
        %v297 = vcvt.s32.f32 %v296
        %vm298 = vcmp.eq.s32.totalorder %v261, 1
        %v299 = vsel %vm298, 1, 0
        %v300 = vcvt.s32.f32 %v299
        %v301 = vmul.f32 %v297, %v300
        %v302 = vsel %vm279, %v301, 0.0
        %v303 = vrot.slane %v302, 4
        %v304 = vadd.f32 %v302, %v303
        %v305 = vrot.slane %v304, 2
        %v306 = vadd.f32 %v304, %v305
        %v307 = vrot.slane %v306, 1
        %v308 = vadd.f32 %v306, %v307
        %v309 = vadd.f32 %v297, %v300
        %v310 = vsel %vm279, %v309, 0.0
        %v311 = vrot.slane %v310, 4
        %v312 = vadd.f32 %v310, %v311
        %v313 = vrot.slane %v312, 2
        %v314 = vadd.f32 %v312, %v313
        %v315 = vrot.slane %v314, 1
        %v316 = vadd.f32 %v314, %v315
        %vm317 = vcmp.eq.s32.totalorder %v271, 2
        %v318 = vsel %vm317, 1, 0
        %v319 = vcvt.s32.f32 %v318
        %vm320 = vcmp.eq.s32.totalorder %v261, 2
        %v321 = vsel %vm320, 1, 0
        %v322 = vcvt.s32.f32 %v321
        %v323 = vmul.f32 %v319, %v322
        %v324 = vsel %vm279, %v323, 0.0
        %v325 = vrot.slane %v324, 4
        %v326 = vadd.f32 %v324, %v325
        %v327 = vrot.slane %v326, 2
        %v328 = vadd.f32 %v326, %v327
        %v329 = vrot.slane %v328, 1
        %v330 = vadd.f32 %v328, %v329
        %v331 = vadd.f32 %v319, %v322
        %v332 = vsel %vm279, %v331, 0.0
        %v333 = vrot.slane %v332, 4
        %v334 = vadd.f32 %v332, %v333
        %v335 = vrot.slane %v334, 2
        %v336 = vadd.f32 %v334, %v335
        %v337 = vrot.slane %v336, 1
        %v338 = vadd.f32 %v336, %v337
        %v339 = vld [vmem:[%s250] sm:$0x7]
        %vm340 = vcmask 1040384
        %v341 = vsel %vm340, %v286, %v308
        %v342 = vsel %vm279, %v341, %v330
        %v343 = vadd.f32 %v339, %v342
        %344 = vst [vmem:[%s250] sm:$0x7] %v343
        %v345 = vld [vmem:[%s254] sm:$0x7]
        %v346 = vsel %vm340, %v294, %v316
        %v347 = vsel %vm279, %v346, %v338
        %v348 = vadd.f32 %v345, %v347
        %349 = vst [vmem:[%s254] sm:$0x7] %v348
        %p350 = scmp.lt.s32.totalorder %s25, 1
        %s351 = scalar_select %p350, %s25, 1
        %s352 = smul.addr %s351, 4
        %s353 = scalar_lea.vmem %s2, %s352
        %p354 = scmp.lt.s32.totalorder %s25, 1
        %s355 = scalar_select %p354, %s25, 1
        %s356 = smul.addr %s355, 4
        %s357 = scalar_lea.vmem %s3, %s356
        // Predicated region
        $region41: #{tpu_custom_call.1} parent=27 // pred_check
          %p358 = pneg %p107
        $region42: #{tpu_custom_call.1} parent=27 // pred_check_branch
          %360 = sbr.rel (%p358) target = $region44
        $region43: #{tpu_custom_call.1} parent=27 // pred_region
          _
        $region44: #{tpu_custom_call.1} parent=27 // pred_fallthru
          _
        // Predicated region
        $region45: #{tpu_custom_call.1} parent=27 // pred_check
          %p361 = pneg %p133
        $region46: #{tpu_custom_call.1} parent=27 // pred_check_branch
          %363 = sbr.rel (%p361) target = $region48
        $region47: #{tpu_custom_call.1} parent=27 // pred_region
          _
        $region48: #{tpu_custom_call.1} parent=27 // pred_fallthru
          _
      $region28: #{tpu_custom_call.1} parent=5 // pred_fallthru
        _
      %p364 = scmp.le.s32.totalorder 2, %s16
      // Predicated region
      $region49: #{tpu_custom_call.1} parent=5 // pred_check
        %p365 = pneg %p364
      $region50: #{tpu_custom_call.1} parent=5 // pred_check_branch
        %367 = sbr.rel (%p365) target = $region52
      $region51: #{tpu_custom_call.1} parent=5 // pred_region
        %s368 = ssub.s32 %s16, 2
        // Predicated region
        $region53: #{tpu_custom_call.1} parent=51 // pred_check
          %p369 = pneg %p113
        $region54: #{tpu_custom_call.1} parent=51 // pred_check_branch
          %371 = sbr.rel (%p369) target = $region56
        $region55: #{tpu_custom_call.1} parent=51 // pred_region
          %p372 = scmp.lt.s32.totalorder %s27, 1
          %s373 = scalar_select %p372, %s27, 1
          %s374 = smul.addr %s373, 4
          %s375 = scalar_lea.vmem %s2, %s374
        $region56: #{tpu_custom_call.1} parent=51 // pred_fallthru
          _
        // Predicated region
        $region57: #{tpu_custom_call.1} parent=51 // pred_check
          %p376 = pneg %p139
        $region58: #{tpu_custom_call.1} parent=51 // pred_check_branch
          %378 = sbr.rel (%p376) target = $region60
        $region59: #{tpu_custom_call.1} parent=51 // pred_region
          %p379 = scmp.lt.s32.totalorder %s27, 1
          %s380 = scalar_select %p379, %s27, 1
          %s381 = smul.addr %s380, 4
          %s382 = scalar_lea.vmem %s3, %s381
        $region60: #{tpu_custom_call.1} parent=51 // pred_fallthru
          _
      $region52: #{tpu_custom_call.1} parent=5 // pred_fallthru
        _
    $region6: #{tpu_custom_call.1} parent=1 // loop_footer
      %s20 = sadd.s32 1, %s16
    $region7: #{tpu_custom_call.1} parent=1 // loop_footer_branch
      %15 = sbr.rel target = $region3
    $region8: #{tpu_custom_call.1} parent=1 // loop_exit
      _
    %383 = vsyncpa [#allocation3], 1
    %s384 = scalar_lea.sflag [#allocation3], 1
    %385 = vsyncpa %s384, 1
    %386 = vsyncpa [#allocation5], 1
    %s387 = scalar_lea.sflag [#allocation5], 1
    %388 = vsyncpa %s387, 1

</llo_original>
